<compile_context>
chip_gen: v6e
topology: v6e:2x2x1
jax: 0.10.0
libtpu: 0.0.40
codegen_flags: <defaults>
</compile_context>

<pallas_src>
import functools
import math

import jax
import jax.numpy as jnp
from jax import lax
from jax.experimental import pallas as pl
from jax.experimental.pallas import tpu as pltpu

_SUB = 8  # sublanes per vreg


def _cdiv(a, b):
    return -(-a // b)


def _is_v7x():
    try:
        kind = str(jax.devices()[0].device_kind).lower()
    except Exception:
        return False
    return "v7" in kind


# --------------------------------------------------------------------------
# Kernel 1: sum (or sum-of-squares) of a lane-dense 2D slab  (mean / norm)
# --------------------------------------------------------------------------
def _sum_kernel(x_ref, out_ref, acc_ref, *, rows, tm, n_i, square, ragged):
    i = pl.program_id(1)

    @pl.when(i == 0)
    def _():
        acc_ref[...] = jnp.zeros_like(acc_ref)

    x = x_ref[...].astype(jnp.float32)                      # (tm, lanes)
    if ragged:
        # Boundary block: rows beyond the true extent hold unspecified data.
        start = (pl.program_id(0) * n_i + i) * tm
        rid = lax.broadcasted_iota(jnp.int32, x.shape, 0)
        x = jnp.where(rid < (rows - start), x, 0.0)          # select: NaN-safe
    if square:
        x = x * x
    if tm % _SUB == 0 and tm > _SUB:
        # Fold the tile to an 8-row partial in-vreg (tree of VPU adds) so the
        # VMEM accumulator sees exactly one RMW per input tile.
        x = jnp.sum(x.reshape(tm // _SUB, _SUB, x.shape[-1]), axis=0)
    acc_ref[...] += x

    @pl.when(i == pl.num_programs(1) - 1)
    def _():
        out_ref[...] = jnp.sum(acc_ref[...], keepdims=True)  # single XLU reduce


def _lane_dense_view(x):
    """Free (no-copy) 2D view (rows, lanes); lane dim is a multiple of 128 when
    the element count allows it, otherwise the trailing dim of x."""
    size = int(math.prod(x.shape))
    flat = x.reshape(-1)
    for lanes in (1024, 512, 256, 128):
        if size % lanes == 0:
            return flat.reshape(size // lanes, lanes)
    if x.ndim >= 2:
        return x.reshape(-1, x.shape[-1])
    return flat.reshape(size, 1)


def _reduce_scalar(x, *, square):
    """Returns sum(x) (square=False) or sum(x*x) (square=True) as an f32 scalar."""
    x2d = _lane_dense_view(x)
    rows, lanes = x2d.shape
    v7x = _is_v7x()

    # Per-input-tile working budget (f32); bigger tiles on v7x (3.2 TB/s HBM).
    budget = (4 << 20) if v7x else (2 << 20)
    max_tm = min(1024 if v7x else 512,
                 max(_SUB, (budget // (lanes * 4)) // _SUB * _SUB))
    if rows >= _SUB:
        tm = min(max_tm, (rows // _SUB) * _SUB)
    else:
        tm = rows                                            # tiny input: one full block
    n_blocks = _cdiv(rows, tm)
    ragged = (rows % tm) != 0
    # Engage both TensorCores only on v7x (single-core chips would just serialize).
    parts = 2 if (v7x and n_blocks >= 2 and n_blocks % 2 == 0) else 1
    n_i = n_blocks // parts
    acc_rows = _SUB if tm % _SUB == 0 else tm

    kernel = functools.partial(_sum_kernel, rows=rows, tm=tm, n_i=n_i,
                               square=square, ragged=ragged)
    partials = pl.pallas_call(
        kernel,
        out_shape=jax.ShapeDtypeStruct((parts, 1, 1), jnp.float32),
        grid_spec=pltpu.PrefetchScalarGridSpec(
            num_scalar_prefetch=0,
            grid=(parts, n_i),
            in_specs=[pl.BlockSpec((tm, lanes), lambda p, i: (p * n_i + i, 0))],
            out_specs=pl.BlockSpec((None, 1, 1), lambda p, i: (p, 0, 0)),
            scratch_shapes=[pltpu.VMEM((acc_rows, lanes), jnp.float32)]),
        compiler_params=pltpu.CompilerParams(
            dimension_semantics=("parallel", "arbitrary")),
        cost_estimate=pl.CostEstimate(
            flops=(2 if square else 1) * rows * lanes,
            transcendentals=0,
            bytes_accessed=rows * lanes * x2d.dtype.itemsize),
    )(x2d)
    return jnp.sum(partials)


# --------------------------------------------------------------------------
# Kernel 2: count of positions whose channel-argmax flipped (nflips / nNflips)
# --------------------------------------------------------------------------
def _flip_kernel(p_ref, q_ref, out_ref, acc_ref, *, num_rows, tr, chunk_rows,
                 ragged):
    j = pl.program_id(1)

    @pl.when(j == 0)
    def _():
        acc_ref[...] = jnp.zeros_like(acc_ref)

    num_c = p_ref.shape[0]

    # Per 8-row sublane chunk, channel loop innermost: live state is only
    # 4 x (chunk_rows, lp) plus the two chunk loads -> no vreg spills.
    for k in range(tr // chunk_rows):                        # static, <= 32 chunks
        p = p_ref[:, pl.ds(k * chunk_rows, chunk_rows), :]   # (C, chunk_rows, lp)
        q = q_ref[:, pl.ds(k * chunk_rows, chunk_rows), :]
        best_p, best_q = p[0], q[0]                          # native dtype compare
        arg_p = jnp.zeros(best_p.shape, jnp.int32)
        arg_q = jnp.zeros(best_q.shape, jnp.int32)
        # First-occurrence argmax (matches jnp.argmax for finite values; NaN /
        # tie handling differs from torch.argmax -- assumed finite inputs).
        for c in range(1, num_c):
            vp = p[c]
            gp = vp > best_p
            best_p = jnp.where(gp, vp, best_p)
            arg_p = jnp.where(gp, c, arg_p)
            vq = q[c]
            gq = vq > best_q
            best_q = jnp.where(gq, vq, best_q)
            arg_q = jnp.where(gq, c, arg_q)
        flips = (arg_p != arg_q).astype(jnp.int32)
        if ragged:
            start = j * tr + k * chunk_rows
            rid = lax.broadcasted_iota(jnp.int32, flips.shape, 0)
            flips = jnp.where(rid < (num_rows - start), flips, 0)
        acc_ref[...] += flips

    @pl.when(j == pl.num_programs(1) - 1)
    def _():
        out_ref[...] = jnp.sum(acc_ref[...], keepdims=True)


def _flip_count(pred, pred_r):
    """Exact int32 count of positions whose channel argmax differs."""
    n, c, h, w = pred.shape
    if c == 1:
        return jnp.zeros((), jnp.int32)                      # single class never flips
    hw = h * w
    itemsize = pred.dtype.itemsize

    # Free (no-copy) view (n, c, R, lp): lane-dense over H*W when divisible,
    # otherwise the native (h, w) layout (lanes = w).  No padding, ever.
    lp = None
    for cand in (512, 256, 128):
        if hw % cand == 0:
            lp = cand
            break
    if lp is not None and c * _SUB * lp * itemsize > (1 << 20):
        lp = 128                                             # keep tiles small for large C
    if lp is not None:
        p4 = pred.reshape(n, c, hw // lp, lp)
        q4 = pred_r.reshape(n, c, hw // lp, lp)
    else:
        p4, q4 = pred, pred_r
        lp = w
    R = p4.shape[2]

    budget = 1 << 20                                         # per-input tile bytes
    max_tr = min(256, max(_SUB, (budget // (c * lp * itemsize)) // _SUB * _SUB))
    if R >= _SUB:
        tr = min(max_tr, (R // _SUB) * _SUB)
        chunk_rows = _SUB
    else:
        tr = R
        chunk_rows = R
    n_j = _cdiv(R, tr)
    ragged = (R % tr) != 0

    # TODO(synk): on v7x with N == 1 the batch ("parallel") axis has extent 1,
    # leaving one TensorCore idle; a size-2 split of the row-block axis would fix it.
    kernel = functools.partial(_flip_kernel, num_rows=R, tr=tr,
                               chunk_rows=chunk_rows, ragged=ragged)
    counts = pl.pallas_call(
        kernel,
        out_shape=jax.ShapeDtypeStruct((n, 1, 1), jnp.int32),
        grid_spec=pltpu.PrefetchScalarGridSpec(
            num_scalar_prefetch=0,
            grid=(n, n_j),
            in_specs=[pl.BlockSpec((None, c, tr, lp), lambda b, j: (b, 0, j, 0)),
                      pl.BlockSpec((None, c, tr, lp), lambda b, j: (b, 0, j, 0))],
            out_specs=pl.BlockSpec((None, 1, 1), lambda b, j: (b, 0, 0)),
            scratch_shapes=[pltpu.VMEM((chunk_rows, lp), jnp.int32)]),
        compiler_params=pltpu.CompilerParams(
            dimension_semantics=("parallel", "arbitrary")),
        cost_estimate=pl.CostEstimate(
            flops=6 * n * c * hw,
            transcendentals=0,
            bytes_accessed=2 * n * c * hw * itemsize),
    )(p4, q4)
    return jnp.sum(counts)


# --------------------------------------------------------------------------
# Module-equivalent wrapper
# --------------------------------------------------------------------------
class UMapScorePerSlice:
    """Pallas/JAX port of the PyTorch UMapScorePerSlice module (no parameters)."""

    def __init__(self, reduction: str):
        self.r = reduction
        self.dim = (1, 2, 3)

    def __call__(self, umap=None, pred=None, pred_r=None):
        if self.r == 'mean':
            assert umap is not None, 'reduction is set to mean over umap, but umap is None'
            s = _reduce_scalar(umap, square=False)
            return s / jnp.float32(umap.size)
        elif self.r == 'norm':
            assert umap is not None, 'reduction is set to norm of umap, but umap is None'
            q = _reduce_scalar(umap, square=True)
            return jnp.sqrt(q)
        elif self.r == 'nflips':
            assert pred is not None, 'reduction is set to fraction of flipped predictions, but pred is None'
            assert pred_r is not None, 'reduction is set to fraction of flipped predictions, but pred_r is None'
            return _flip_count(pred, pred_r).astype(jnp.float32)
        elif self.r == 'nNflips':
            assert pred is not None, 'reduction is set to number of flipped predictions, but pred is None'
            assert pred_r is not None, 'reduction is set to number of flipped predictions, but pred_r is None'
            n, _, h, w = pred.shape
            cnt = _flip_count(pred, pred_r).astype(jnp.float32)
            return cnt / jnp.float32(n * h * w)              # flip_mask has shape (N,1,H,W)


# --------------------------------------------------------------------------
if __name__ == "__main__":
    key = jax.random.PRNGKey(0)

    def _check(shape, tag):
        k1, k2, k3 = jax.random.split(jax.random.fold_in(key, tag), 3)
        umap = jax.random.uniform(k1, shape, dtype=jnp.float32)
        pred = jax.random.normal(k2, shape, dtype=jnp.float32)
        pred_r = jax.random.normal(k3, shape, dtype=jnp.float32)

        got = {}
        for r in ("mean", "norm", "nflips", "nNflips"):
            got[r] = jax.block_until_ready(
                UMapScorePerSlice(r)(umap=umap, pred=pred, pred_r=pred_r))

        # Pure-JAX references (same semantics as the PyTorch module).
        ref_mean = jnp.mean(umap)
        ref_norm = jnp.sqrt(jnp.sum(umap * umap))
        fm = (jnp.argmax(pred, axis=1) != jnp.argmax(pred_r, axis=1)).astype(jnp.float32)
        ref_nflips = jnp.sum(fm)
        ref_nNflips = jnp.mean(fm)

        assert jnp.allclose(got["mean"], ref_mean, rtol=1e-5, atol=1e-6), (shape, got["mean"], ref_mean)
        assert jnp.allclose(got["norm"], ref_norm, rtol=1e-5, atol=1e-5), (shape, got["norm"], ref_norm)
        assert jnp.allclose(got["nflips"], ref_nflips), (shape, got["nflips"], ref_nflips)
        assert jnp.allclose(got["nNflips"], ref_nNflips, rtol=1e-6, atol=1e-6), (shape, got["nNflips"], ref_nNflips)

    _check((2, 4, 16, 16), tag=0)   # lane-aligned path (no boundary blocks)
    _check((1, 3, 17, 24), tag=1)   # ragged path: boundary blocks + in-kernel masking

    print("KERNEL_OK")
</pallas_src>

<mosaic_0001>
module attributes {stable_mosaic.version = 11 : i64} {
  func.func @_sum_kernel(%arg0: i32, %arg1: i32, %arg2: memref<2x1024xf32, #tpu.memory_space<vmem>>, %arg3: memref<1x1x1xf32, #tpu.memory_space<vmem>>, %arg4: memref<2x1024xf32, #tpu.memory_space<vmem>>) attributes {dimension_semantics = [#tpu.dimension_semantics<parallel>, #tpu.dimension_semantics<arbitrary>], iteration_bounds = array<i64: 1, 1>, scalar_prefetch = 0 : i64, scratch_operands = 1 : i64, tpu.core_type = #tpu.core_type<tc>, window_params = [{transform_indices = @transform_0, window_bounds = array<i64: 2, 1024>}, {transform_indices = @transform_1, window_bounds = array<i64: 1, 1, 1>}]} {
    %c0_i32 = arith.constant 0 : i32
    %0 = arith.cmpi eq, %arg1, %c0_i32 : i32
    %1 = arith.extui %0 : i1 to i32
    %c0_i32_0 = arith.constant 0 : i32
    %2 = arith.cmpi ne, %1, %c0_i32_0 : i32
    scf.if %2 {
      %cst = arith.constant 0.000000e+00 : f32
      %10 = vector.broadcast %cst : f32 to vector<2x1024xf32>
      %c0_8 = arith.constant 0 : index
      %c0_9 = arith.constant 0 : index
      %11 = vector.load %arg4[%c0_8, %c0_9] : memref<2x1024xf32, #tpu.memory_space<vmem>>, vector<2x1024xf32>
      tpu.vector_store %arg4[%c0_8, %c0_9], %10 {strides = array<i32>} : memref<2x1024xf32, #tpu.memory_space<vmem>>, vector<2x1024xf32>,
    } else {
    }
    %c0 = arith.constant 0 : index
    %c0_1 = arith.constant 0 : index
    %3 = vector.load %arg2[%c0, %c0_1] : memref<2x1024xf32, #tpu.memory_space<vmem>>, vector<2x1024xf32>
    %c0_2 = arith.constant 0 : index
    %c0_3 = arith.constant 0 : index
    %4 = vector.load %arg4[%c0_2, %c0_3] : memref<2x1024xf32, #tpu.memory_space<vmem>>, vector<2x1024xf32>
    %5 = arith.addf %4, %3 : vector<2x1024xf32>
    %c0_4 = arith.constant 0 : index
    %c0_5 = arith.constant 0 : index
    %6 = vector.load %arg4[%c0_4, %c0_5] : memref<2x1024xf32, #tpu.memory_space<vmem>>, vector<2x1024xf32>
    tpu.vector_store %arg4[%c0_4, %c0_5], %5 {strides = array<i32>} : memref<2x1024xf32, #tpu.memory_space<vmem>>, vector<2x1024xf32>,
    %c0_i32_6 = arith.constant 0 : i32
    %7 = arith.cmpi eq, %arg1, %c0_i32_6 : i32
    %8 = arith.extui %7 : i1 to i32
    %c0_i32_7 = arith.constant 0 : i32
    %9 = arith.cmpi ne, %8, %c0_i32_7 : i32
    scf.if %9 {
      %c0_8 = arith.constant 0 : index
      %c0_9 = arith.constant 0 : index
      %10 = vector.load %arg4[%c0_8, %c0_9] : memref<2x1024xf32, #tpu.memory_space<vmem>>, vector<2x1024xf32>
      %11 = vector.shape_cast %10 : vector<2x1024xf32> to vector<1x2x1024xf32>
      %cst = arith.constant dense<0.000000e+00> : vector<1xf32>
      %12 = vector.multi_reduction <add>, %11, %cst [1, 2] : vector<1x2x1024xf32> to vector<1xf32>
      %13 = vector.shape_cast %12 : vector<1xf32> to vector<1x1x1xf32>
      %14 = vector.extract %13[0, 0, 0] : f32 from vector<1x1x1xf32>
      %15 = vector.broadcast %14 : f32 to vector<1x1xf32>
      %c0_10 = arith.constant 0 : index
      %c0_11 = arith.constant 0 : index
      %c0_12 = arith.constant 0 : index
      %16 = vector.load %arg3[%c0_10, %c0_11, %c0_12] : memref<1x1x1xf32, #tpu.memory_space<vmem>>, vector<1x1x1xf32>
      %17 = vector.shape_cast %16 : vector<1x1x1xf32> to vector<1x1xf32>
      %18 = vector.shape_cast %15 : vector<1x1xf32> to vector<1x1x1xf32>
      tpu.vector_store %arg3[%c0_10, %c0_11, %c0_12], %18 {strides = array<i32>} : memref<1x1x1xf32, #tpu.memory_space<vmem>>, vector<1x1x1xf32>,
    } else {
    }
    return
  }
  func.func @transform_0(%arg0: i32, %arg1: i32) -> (i32, i32) {
    %c1_i32 = arith.constant 1 : i32
    %0 = arith.muli %arg0, %c1_i32 : i32
    %1 = arith.addi %0, %arg1 : i32
    %c0_i32 = arith.constant 0 : i32
    %c0_i32_0 = arith.constant 0 : i32
    return %1, %c0_i32 : i32, i32
  }
  func.func @transform_1(%arg0: i32, %arg1: i32) -> (i32, i32, i32) {
    %c0_i32 = arith.constant 0 : i32
    %c0_i32_0 = arith.constant 0 : i32
    %c0_i32_1 = arith.constant 0 : i32
    return %arg0, %c0_i32, %c0_i32_0 : i32, i32, i32
  }
}

</mosaic_0001>

<llo_original>
// kernel: tpu_custom_call.1
$region0: #{tpu_custom_call.1}
  #allocation0 [shape = 'u32[]', space=smem, size = 0x4, offset = 0x4, fixed_abs, tag = 'smem constant byte address 0x4 - core index']
  #allocation1 [shape = 'u32[144,128]{1,0:T(1,128)}', space=vmem, size = 0x12000, scoped, tag = 'internal scratch']
  #allocation2 [shape = 'f32[2,1024]{1,0:T(2,128)}', space=vmem, size = 0x2000, scoped, tag = 'scratch operand']
  %s0 = inlined_call_operand.hbm [shape: f32[2,1024], index: 0, kind: input, shape index: {}]
  %s1 = inlined_call_operand.hbm [shape: f32[1,1,1], index: 1, kind: output, shape index: {}]
  %s2 = sld [smem:[#allocation0]]
  $region26: #{tpu_custom_call.1} parent=0
    _
  %s4 = ssub.s32 1, %s2
  %s5 = scalar_select 0, %s4, %s2
  $region1: #{tpu_custom_call.1} parent=0
    #allocation3 [shape = 'u8[8192]{0}', space=vmem, size = 0x2000, scoped, tag = 'input window, operand 0, single buffered']
    #allocation4 [shape = 's32[1]{0}', space=sflag, size = 0x4, scoped, tag = 'scoped memory for tpu_custom_call.1']
    #allocation5 [shape = 's32[1]{0}', space=sflag, size = 0x4, scoped, tag = 'scoped memory for tpu_custom_call.1']
    #allocation6 [shape = 'u8[512]{0}', space=vmem, size = 0x400, scoped, tag = 'output window, operand 0, single buffered']
    %6 = vsyncpa [#allocation4], 0
    %7 = vsyncpa [#allocation5], 0
    // Predicated region
    $region2: #{tpu_custom_call.1} parent=1 // pred_check
      _
    $region3: #{tpu_custom_call.1} parent=1 // pred_check_branch
      %9 = sbr.rel (0) target = $region5
    $region4: #{tpu_custom_call.1} parent=1 // pred_region
      %s10 = sadd.s32 0, 0
      %s12 = ssub.s32 256, 256
      %13 = vsyncadd [#allocation4], %s12
      %s14 = smul.addr %s10, 8
      %s15 = smul.addr %s14, 32
      %s16 = scalar_lea.hbm %s0, %s15
      %s18 = sshll.u32 [#allocation3], 4
      %s19 = int_to_ptr.vmem [resolvable:$true] %s18
      %21 = dma.hbm_to_vmem [thread:$0]  %s16, 256, %s19, [#allocation4]
    $region5: #{tpu_custom_call.1} parent=1 // pred_fallthru
      _
    // Predicated region
    $region6: #{tpu_custom_call.1} parent=1 // pred_check
      _
    $region7: #{tpu_custom_call.1} parent=1 // pred_check_branch
      %23 = sbr.rel (0) target = $region9
    $region8: #{tpu_custom_call.1} parent=1 // pred_region
      %24 = dma.done [#allocation4], 256
    $region9: #{tpu_custom_call.1} parent=1 // pred_fallthru
      _
    %s25 = sadd.s32 0, 0
    %p26 = scmp.eq.s32.totalorder 0, 0
    // Predicated region
    $region10: #{tpu_custom_call.1} parent=1 // pred_check
      %p27 = pneg %p26
    $region11: #{tpu_custom_call.1} parent=1 // pred_check_branch
      %29 = sbr.rel (%p27) target = $region13
    $region12: #{tpu_custom_call.1} parent=1 // pred_region
      %30 = vst [vmem:[#allocation2] sm:$0xff] 0.0
      %31 = vst [vmem:[#allocation2 + $0x8] sm:$0xff] 0.0
    $region13: #{tpu_custom_call.1} parent=1 // pred_fallthru
      _
    %v32 = vld [vmem:[#allocation3] sm:$0xff]
    %v33 = vld [vmem:[#allocation3 + $0x8] sm:$0xff]
    %v34 = vld [vmem:[#allocation2] sm:$0xff]
    %v35 = vld [vmem:[#allocation2 + $0x8] sm:$0xff]
    %v36 = vadd.f32 %v34, %v32
    %v37 = vadd.f32 %v35, %v33
    %38 = vst [vmem:[#allocation2] sm:$0xff] %v36
    %39 = vst [vmem:[#allocation2 + $0x8] sm:$0xff] %v37
    // Predicated region
    $region14: #{tpu_custom_call.1} parent=1 // pred_check
      %p40 = pneg %p26
    $region15: #{tpu_custom_call.1} parent=1 // pred_check_branch
      %42 = sbr.rel (%p40) target = $region17
    $region16: #{tpu_custom_call.1} parent=1 // pred_region
      %v43 = vld [vmem:[#allocation2] sm:$0xff]
      %v44 = vld [vmem:[#allocation2 + $0x8] sm:$0xff]
      %v47 = vcombine.high %v43, %v43
      %v49 = vunpack.c.l.s4 1983009808
      %v50 = vunpack.c.0.s8 %v49
      %v51 = vlaneseq
      %v52 = vshrl.u32 %v51, 7
      %v53 = vsub.s32 %v50, %v52
      %v54 = vrot.slane %v43, %v53
      %v56 = vunpack.c.l.s4 1983009808
      %v57 = vunpack.c.0.s8 %v56
      %v58 = vlaneseq
      %v59 = vshrl.u32 %v58, 7
      %v60 = vsub.s32 %v57, %v59
      %v61 = vrot.slane %v47, %v60
      %v62 = vcombine.high %v54, %v54
      %v63 = vcombine.high %v61, %v61
      %v64 = vcombine.high %v44, %v44
      %v66 = vunpack.c.l.s4 1983009808
      %v67 = vunpack.c.0.s8 %v66
      %v68 = vlaneseq
      %v69 = vshrl.u32 %v68, 7
      %v70 = vsub.s32 %v67, %v69
      %v71 = vrot.slane %v44, %v70
      %v73 = vunpack.c.l.s4 1983009808
      %v74 = vunpack.c.0.s8 %v73
      %v75 = vlaneseq
      %v76 = vshrl.u32 %v75, 7
      %v77 = vsub.s32 %v74, %v76
      %v78 = vrot.slane %v64, %v77
      %v79 = vcombine.high %v71, %v71
      %v80 = vcombine.high %v78, %v78
      %vm89 = vcmask 1041408
      %v90 = vsel %vm89, %v54, 0.0
      %v91 = vsel %vm89, %v62, 0.0
      %v92 = vadd.f32 %v90, %v91
      %v93 = vsel %vm89, %v61, 0.0
      %v94 = vadd.f32 %v92, %v93
      %v95 = vsel %vm89, %v63, 0.0
      %v96 = vadd.f32 %v94, %v95
      %v97 = vsel %vm89, %v71, 0.0
      %v98 = vadd.f32 %v96, %v97
      %v99 = vsel %vm89, %v79, 0.0
      %v100 = vadd.f32 %v98, %v99
      %v101 = vsel %vm89, %v78, 0.0
      %v102 = vadd.f32 %v100, %v101
      %v103 = vsel %vm89, %v80, 0.0
      %v104 = vadd.f32 %v102, %v103
      %105 = vadd.xlane.f32.xlu0 %v104
      %v106 = vpop.xlane.xlu0 %105
      %v107 = vrot.slane %v106, 4
      %v108 = vadd.f32 %v106, %v107
      %v109 = vrot.slane %v108, 2
      %v110 = vadd.f32 %v108, %v109
      %v111 = vrot.slane %v110, 1
      %v112 = vadd.f32 %v110, %v111
      %s113 = vtos %v112
      %v114 = vstv %s113
      %vm115 = vcmask 0
      %116 = vst.msk [vmem:[#allocation6] sm:$0x1] %vm115, %v114
    $region17: #{tpu_custom_call.1} parent=1 // pred_fallthru
      _
    // Predicated region
    $region18: #{tpu_custom_call.1} parent=1 // pred_check
      _
    $region19: #{tpu_custom_call.1} parent=1 // pred_check_branch
      %118 = sbr.rel (0) target = $region21
    $region20: #{tpu_custom_call.1} parent=1 // pred_region
      %s120 = ssub.s32 16, 16
      %121 = vsyncadd [#allocation5], %s120
      %s123 = sshll.u32 [#allocation6], 4
      %s124 = int_to_ptr.vmem [resolvable:$true] %s123
      %126 = dma.vmem_to_hbm [thread:$0]  %s124, 16, %s1, [#allocation5]
    $region21: #{tpu_custom_call.1} parent=1 // pred_fallthru
      _
    // Predicated region
    $region22: #{tpu_custom_call.1} parent=1 // pred_check
      _
    $region23: #{tpu_custom_call.1} parent=1 // pred_check_branch
      %128 = sbr.rel (0) target = $region25
    $region24: #{tpu_custom_call.1} parent=1 // pred_region
      %129 = dma.done [#allocation5], 16
    $region25: #{tpu_custom_call.1} parent=1 // pred_fallthru
      _
    %130 = vsyncpa [#allocation4], 1
    %131 = vsyncpa [#allocation5], 1

</llo_original>
